<compile_context>
chip_gen: v7x
topology: tpu7x:2x2x1
jax: 0.10.0
libtpu: 0.0.40
codegen_flags: <defaults>
</compile_context>

<pallas_src>
import functools
import math

import jax
import jax.numpy as jnp
from jax.experimental import pallas as pl
from jax.experimental.pallas import tpu as pltpu

_LANE = 128            # lane width: hidden-dim padding target (dense MXU tiles)
_SUBLANE = 8           # f32 sublane: row-tile granularity
_MAX_TILE_ROWS = 2048  # hard cap so tiles stay VMEM-safe on v7x (64 MiB parts)
_MIN_SPLIT_ROWS = 128  # min rows per tile worth sharding across 2 TensorCores
_TILE_VMEM_BUDGET = 24 << 20  # keep the tiled path under the default scoped VMEM


def _round_up(n, m):
    return ((n + m - 1) // m) * m


def _cdiv(a, b):
    return -(-a // b)


def _make_fused_kernel(n_layers):
    """Kernel computing the whole MLP on one (row_tile, features) block.

    refs = (x_ref, w0, b0, ..., w_{L-1}, b_{L-1}, o_ref). Activations stay in
    vregs/VMEM; MXU accumulation is f32; bias-add / ReLU run in f32 (v5e-safe
    even when the stored operands are bf16).
    """
    def kernel(*refs):
        x_ref = refs[0]
        o_ref = refs[-1]
        wb = refs[1:-1]
        h = x_ref[...]
        for l in range(n_layers):
            w = wb[2 * l][...]
            b = wb[2 * l + 1][...]              # (1, Dout_l) f32, row-broadcast
            y = jnp.dot(h.astype(w.dtype), w,
                        preferred_element_type=jnp.float32) + b
            h = jnp.maximum(y, 0.0)             # f32
        o_ref[...] = h.astype(o_ref.dtype)
    return kernel


def prepare_params(params, compute_dtype=jnp.float32):
    """Pad weights/biases ONCE (call outside the jitted forward and reuse).

    params: list of (W [in, out], b [out]) — W already transposed vs torch.
    Hidden feature dims are zero-padded to multiples of 128; the network input
    dim and the final output dim keep their natural width so the x / out HBM
    streams carry no padding.
    """
    dims = [params[0][0].shape[0]] + [w.shape[1] for (w, _) in params]
    pdims = ([dims[0]]
             + [_round_up(d, _LANE) for d in dims[1:-1]]
             + [dims[-1]])
    padded = []
    for l, (w, b) in enumerate(params):
        din, dout = w.shape
        w_p = (jnp.zeros((pdims[l], pdims[l + 1]), compute_dtype)
               .at[:din, :dout].set(w.astype(compute_dtype)))
        b_p = (jnp.zeros((1, pdims[l + 1]), jnp.float32)
               .at[0, :dout].set(b.astype(jnp.float32)))
        padded.append((w_p, b_p))
    return padded


def _choose_tiling(batch, din, dout, max_feat, x_itemsize, row_tile):
    # Per-row streaming footprint of the tiled path: double-buffered x and out
    # blocks plus a few f32 activation slabs for the widest layer.
    per_row = 2 * (din + dout) * x_itemsize + 3 * max_feat * 4
    vmem_cap = max(_SUBLANE,
                   ((_TILE_VMEM_BUDGET // max(per_row, 1)) // _SUBLANE) * _SUBLANE)
    row_tile = max(_SUBLANE, min(row_tile, vmem_cap, _MAX_TILE_ROWS))
    n_tiles = _cdiv(batch, row_tile)
    if n_tiles == 1 and batch >= 2 * _MIN_SPLIT_ROWS:
        n_tiles = 2                 # v7x: give both TensorCores a row tile
    tile_rows = _round_up(_cdiv(batch, n_tiles), _SUBLANE)
    b_pad = tile_rows * n_tiles
    return n_tiles, tile_rows, b_pad


@functools.partial(jax.jit, static_argnames=("row_tile",))
def net_forward(x, padded_params, *, row_tile=1024):
    """Forward pass of Net as a single fused Pallas TPU kernel.

    x:             [B, input_dim]
    padded_params: output of prepare_params() — build once, reuse every call.
    """
    B, din = x.shape
    n_layers = len(padded_params)
    dout = padded_params[-1][0].shape[1]
    max_feat = max(w.shape[1] for (w, _) in padded_params)

    compute_dtype = padded_params[0][0].dtype
    x = x.astype(compute_dtype)            # match the weight storage dtype

    n_tiles, tile_rows, b_pad = _choose_tiling(
        B, din, dout, max_feat, compute_dtype.itemsize, row_tile)
    if n_tiles == 1:
        b_pad = _round_up(B, _SUBLANE)     # gridless: pad rows to a sublane only

    if b_pad != B:
        # Padded rows compute relu(b) garbage; they are sliced off below.
        x = jnp.pad(x, ((0, b_pad - B), (0, 0)))

    flat_inputs = [x]
    for (w_p, b_p) in padded_params:
        flat_inputs += [w_p, b_p]

    kernel = _make_fused_kernel(n_layers)
    out_shape = jax.ShapeDtypeStruct((b_pad, dout), jnp.float32)

    if n_tiles == 1:
        # Gridless single block: everything resident in VMEM, no per-step
        # pipelining overhead / double-buffered operand copies.
        vmem = pl.BlockSpec(memory_space=pltpu.MemorySpace.VMEM)
        out = pl.pallas_call(
            kernel,
            out_shape=out_shape,
            in_specs=[vmem] * len(flat_inputs),
            out_specs=vmem,
        )(*flat_inputs)
    else:
        # Batch-tiled path: one "parallel" grid axis over row tiles (shards
        # across both TensorCores on v7x); weights are broadcast (same block
        # every step) and amortized across the whole batch.
        in_specs = [pl.BlockSpec((tile_rows, din), lambda i: (i, 0))]
        for (w_p, b_p) in padded_params:
            in_specs.append(pl.BlockSpec(w_p.shape, lambda i: (0, 0)))
            in_specs.append(pl.BlockSpec(b_p.shape, lambda i: (0, 0)))
        out_specs = pl.BlockSpec((tile_rows, dout), lambda i: (i, 0))
        out = pl.pallas_call(
            kernel,
            out_shape=out_shape,
            grid=(n_tiles,),
            in_specs=in_specs,
            out_specs=out_specs,
            compiler_params=pltpu.CompilerParams(
                dimension_semantics=("parallel",)),
        )(*flat_inputs)

    # Only padded rows (if any) are stripped; the feature dim is unpadded.
    return out if b_pad == B else out[:B]


def init_net_params(key, input_dim, output_dim, hidden_layer, hidden_neural):
    """Deterministic init matching Net.__init__'s layer structure.

    Returns a list of (W, b) with W transposed to [in, out]; same
    U(-1/sqrt(fan_in), 1/sqrt(fan_in)) scheme as nn.Linear.
    """
    dims = [(input_dim, hidden_neural[0])]
    for h in range(hidden_layer):
        if h == hidden_layer - 1:
            dims.append((hidden_neural[-1], output_dim))
        else:
            dims.append((hidden_neural[h], hidden_neural[h + 1]))

    params = []
    for (din, dout) in dims:
        key, kw, kb = jax.random.split(key, 3)
        bound = 1.0 / math.sqrt(din)
        w = jax.random.uniform(kw, (din, dout), jnp.float32, -bound, bound)
        b = jax.random.uniform(kb, (dout,), jnp.float32, -bound, bound)
        params.append((w, b))
    return params


if __name__ == "__main__":
    # Small shapes consistent with the module: an MLP over flat feature vectors.
    input_dim = 32
    hidden_layer = 2
    hidden_neural = [64, 32]
    output_dim = 8

    key = jax.random.PRNGKey(0)
    kx, kx2, kp = jax.random.split(key, 3)
    params = init_net_params(kp, input_dim, output_dim, hidden_layer, hidden_neural)

    def reference(xs):
        h = xs
        for (w, b) in params:
            h = jnp.maximum(h @ w + b, 0.0)
        return h

    # --- f32, small batch: gridless single-block path -----------------------
    padded_f32 = prepare_params(params, jnp.float32)
    x_small = jax.random.normal(kx, (8, input_dim), jnp.float32)
    out_small = jax.block_until_ready(net_forward(x_small, padded_f32))
    ref_small = reference(x_small)
    assert out_small.shape == (8, output_dim)
    assert jnp.allclose(out_small, ref_small, atol=1e-4, rtol=1e-4)

    # --- f32, larger batch: batch-tiled "parallel" grid path (2 tiles) ------
    x_big = jax.random.normal(kx2, (512, input_dim), jnp.float32)
    out_big = jax.block_until_ready(net_forward(x_big, padded_f32))
    ref_big = reference(x_big)
    assert out_big.shape == (512, output_dim)
    assert jnp.allclose(out_big, ref_big, atol=1e-4, rtol=1e-4)

    # --- optional bf16 storage (halves HBM traffic; native MXU rate) --------
    padded_bf16 = prepare_params(params, jnp.bfloat16)
    out_bf16 = jax.block_until_ready(net_forward(x_small, padded_bf16))
    err = jnp.max(jnp.abs(out_bf16 - ref_small))
    scale = jnp.maximum(jnp.max(jnp.abs(ref_small)), 1.0)
    assert err <= 5e-2 * scale

    print("KERNEL_OK")
</pallas_src>

<mosaic_0001>
module attributes {stable_mosaic.version = 11 : i64} {
  func.func @kernel(%arg0: memref<8x32xf32, #tpu.memory_space<vmem>>, %arg1: memref<32x128xf32, #tpu.memory_space<vmem>>, %arg2: memref<1x128xf32, #tpu.memory_space<vmem>>, %arg3: memref<128x128xf32, #tpu.memory_space<vmem>>, %arg4: memref<1x128xf32, #tpu.memory_space<vmem>>, %arg5: memref<128x8xf32, #tpu.memory_space<vmem>>, %arg6: memref<1x8xf32, #tpu.memory_space<vmem>>, %arg7: memref<8x8xf32, #tpu.memory_space<vmem>>) attributes {dimension_semantics = [], scalar_prefetch = 0 : i64, scratch_operands = 0 : i64, tpu.core_type = #tpu.core_type<tc>} {
    %c0 = arith.constant 0 : index
    %c0_0 = arith.constant 0 : index
    %0 = vector.load %arg0[%c0, %c0_0] : memref<8x32xf32, #tpu.memory_space<vmem>>, vector<8x32xf32>
    %c0_1 = arith.constant 0 : index
    %c0_2 = arith.constant 0 : index
    %1 = vector.load %arg1[%c0_1, %c0_2] : memref<32x128xf32, #tpu.memory_space<vmem>>, vector<32x128xf32>
    %c0_3 = arith.constant 0 : index
    %c0_4 = arith.constant 0 : index
    %2 = vector.load %arg2[%c0_3, %c0_4] : memref<1x128xf32, #tpu.memory_space<vmem>>, vector<1x128xf32>
    %cst = arith.constant dense<0.000000e+00> : vector<8x128xf32>
    %3 = tpu.matmul %0, %1, %cst {dimension_numbers = #tpu.dot_dimension_numbers<[1], [0], [0], [1], [0, 0, 1, 1], [], []>} : vector<8x32xf32>, vector<32x128xf32>, vector<8x128xf32> -> vector<8x128xf32>
    %4 = vector.broadcast %2 : vector<1x128xf32> to vector<8x128xf32>
    %5 = arith.addf %3, %4 : vector<8x128xf32>
    %cst_5 = arith.constant 0.000000e+00 : f32
    %6 = vector.broadcast %cst_5 : f32 to vector<8x128xf32>
    %7 = arith.maximumf %5, %6 : vector<8x128xf32>
    %c0_6 = arith.constant 0 : index
    %c0_7 = arith.constant 0 : index
    %8 = vector.load %arg3[%c0_6, %c0_7] : memref<128x128xf32, #tpu.memory_space<vmem>>, vector<128x128xf32>
    %c0_8 = arith.constant 0 : index
    %c0_9 = arith.constant 0 : index
    %9 = vector.load %arg4[%c0_8, %c0_9] : memref<1x128xf32, #tpu.memory_space<vmem>>, vector<1x128xf32>
    %cst_10 = arith.constant dense<0.000000e+00> : vector<8x128xf32>
    %10 = tpu.matmul %7, %8, %cst_10 {dimension_numbers = #tpu.dot_dimension_numbers<[1], [0], [0], [1], [0, 0, 1, 1], [], []>} : vector<8x128xf32>, vector<128x128xf32>, vector<8x128xf32> -> vector<8x128xf32>
    %11 = vector.broadcast %9 : vector<1x128xf32> to vector<8x128xf32>
    %12 = arith.addf %10, %11 : vector<8x128xf32>
    %cst_11 = arith.constant 0.000000e+00 : f32
    %13 = vector.broadcast %cst_11 : f32 to vector<8x128xf32>
    %14 = arith.maximumf %12, %13 : vector<8x128xf32>
    %c0_12 = arith.constant 0 : index
    %c0_13 = arith.constant 0 : index
    %15 = vector.load %arg5[%c0_12, %c0_13] : memref<128x8xf32, #tpu.memory_space<vmem>>, vector<128x8xf32>
    %c0_14 = arith.constant 0 : index
    %c0_15 = arith.constant 0 : index
    %16 = vector.load %arg6[%c0_14, %c0_15] : memref<1x8xf32, #tpu.memory_space<vmem>>, vector<1x8xf32>
    %cst_16 = arith.constant dense<0.000000e+00> : vector<8x8xf32>
    %17 = tpu.matmul %14, %15, %cst_16 {dimension_numbers = #tpu.dot_dimension_numbers<[1], [0], [0], [1], [0, 0, 1, 1], [], []>} : vector<8x128xf32>, vector<128x8xf32>, vector<8x8xf32> -> vector<8x8xf32>
    %18 = vector.broadcast %16 : vector<1x8xf32> to vector<8x8xf32>
    %19 = arith.addf %17, %18 : vector<8x8xf32>
    %cst_17 = arith.constant 0.000000e+00 : f32
    %20 = vector.broadcast %cst_17 : f32 to vector<8x8xf32>
    %21 = arith.maximumf %19, %20 : vector<8x8xf32>
    %c0_18 = arith.constant 0 : index
    %c0_19 = arith.constant 0 : index
    %22 = vector.load %arg7[%c0_18, %c0_19] : memref<8x8xf32, #tpu.memory_space<vmem>>, vector<8x8xf32>
    tpu.vector_store %arg7[%c0_18, %c0_19], %21 {strides = array<i32>} : memref<8x8xf32, #tpu.memory_space<vmem>>, vector<8x8xf32>,
    return
  }
}

</mosaic_0001>

<llo_original>
// kernel: net_forward.1
$region0: #{net_forward.1}
  #allocation0 [shape = 'u32[]', space=smem, size = 0x4, offset = 0x4, fixed_abs, tag = 'smem constant byte address 0x4 - core index']
  #allocation1 [shape = 'u32[144,128]{1,0:T(1,128)}', space=vmem, size = 0x12000, scoped, tag = 'internal scratch']
  %s0 = inlined_call_operand.vmem [shape: f32[8,32], index: 0, kind: input, shape index: {}]
  %s1 = inlined_call_operand.hbm [shape: f32[32,128], index: 1, kind: input, shape index: {}]
  %s2 = inlined_call_operand.vmem [shape: f32[1,128], index: 2, kind: input, shape index: {}]
  %s3 = inlined_call_operand.vmem [shape: f32[128,128], index: 3, kind: input, shape index: {}]
  %s4 = inlined_call_operand.vmem [shape: f32[1,128], index: 4, kind: input, shape index: {}]
  %s5 = inlined_call_operand.vmem [shape: f32[128,8], index: 5, kind: input, shape index: {}]
  %s6 = inlined_call_operand.vmem [shape: f32[1,8], index: 6, kind: input, shape index: {}]
  %s7 = inlined_call_operand.hbm [shape: f32[8,8], index: 7, kind: output, shape index: {}]
  %s8 = sld [smem:[#allocation0]]
  $region42: #{net_forward.1} parent=0
    _
  %s10 = ssub.s32 1, %s8
  %s11 = scalar_select 0, %s10, %s8
  $region1: #{net_forward.1} parent=0
    #allocation2 [shape = 'u8[16384]{0}', space=vmem, size = 0x4000, scoped, tag = 'input window, operand 1, single buffered']
    #allocation3 [shape = 's32[1]{0}', space=sflag, size = 0x4, scoped, tag = 'scoped memory for net_forward.1']
    #allocation4 [shape = 's32[1]{0}', space=sflag, size = 0x4, scoped, tag = 'scoped memory for net_forward.1']
    #allocation5 [shape = 'u8[4096]{0}', space=vmem, size = 0x1000, scoped, tag = 'output window, operand 0, single buffered']
    %12 = vsyncpa [#allocation3], 0
    %13 = vsyncpa [#allocation4], 0
    // Predicated region
    $region2: #{net_forward.1} parent=1 // pred_check
      _
    $region3: #{net_forward.1} parent=1 // pred_check_branch
      %15 = sbr.rel (0) target = $region5
    $region4: #{net_forward.1} parent=1 // pred_region
      _
    $region5: #{net_forward.1} parent=1 // pred_fallthru
      _
    // Predicated region
    $region6: #{net_forward.1} parent=1 // pred_check
      _
    $region7: #{net_forward.1} parent=1 // pred_check_branch
      %17 = sbr.rel (0) target = $region9
    $region8: #{net_forward.1} parent=1 // pred_region
      %s19 = ssub.s32 512, 512
      %20 = vsyncadd [#allocation3], %s19
      %s21 = sshll.u32 [#allocation2], 4
      %s22 = int_to_ptr.vmem [resolvable:$true] %s21
      %27 = dma.hbm_to_vmem [thread:$0]  %s1, 512, %s22, [#allocation3], 128, 128, 8
    $region9: #{net_forward.1} parent=1 // pred_fallthru
      _
    // Predicated region
    $region10: #{net_forward.1} parent=1 // pred_check
      _
    $region11: #{net_forward.1} parent=1 // pred_check_branch
      %29 = sbr.rel (0) target = $region13
    $region12: #{net_forward.1} parent=1 // pred_region
      _
    $region13: #{net_forward.1} parent=1 // pred_fallthru
      _
    // Predicated region
    $region14: #{net_forward.1} parent=1 // pred_check
      _
    $region15: #{net_forward.1} parent=1 // pred_check_branch
      %31 = sbr.rel (0) target = $region17
    $region16: #{net_forward.1} parent=1 // pred_region
      _
    $region17: #{net_forward.1} parent=1 // pred_fallthru
      _
    // Predicated region
    $region18: #{net_forward.1} parent=1 // pred_check
      _
    $region19: #{net_forward.1} parent=1 // pred_check_branch
      %33 = sbr.rel (0) target = $region21
    $region20: #{net_forward.1} parent=1 // pred_region
      _
    $region21: #{net_forward.1} parent=1 // pred_fallthru
      _
    // Predicated region
    $region22: #{net_forward.1} parent=1 // pred_check
      _
    $region23: #{net_forward.1} parent=1 // pred_check_branch
      %35 = sbr.rel (0) target = $region25
    $region24: #{net_forward.1} parent=1 // pred_region
      _
    $region25: #{net_forward.1} parent=1 // pred_fallthru
      _
    // Predicated region
    $region26: #{net_forward.1} parent=1 // pred_check
      _
    $region27: #{net_forward.1} parent=1 // pred_check_branch
      %37 = sbr.rel (0) target = $region29
    $region28: #{net_forward.1} parent=1 // pred_region
      _
    $region29: #{net_forward.1} parent=1 // pred_fallthru
      _
    // Predicated region
    $region30: #{net_forward.1} parent=1 // pred_check
      _
    $region31: #{net_forward.1} parent=1 // pred_check_branch
      %39 = sbr.rel (0) target = $region33
    $region32: #{net_forward.1} parent=1 // pred_region
      %40 = dma.done [#allocation3], 512
    $region33: #{net_forward.1} parent=1 // pred_fallthru
      _
    %v41 = vld [vmem:[%s0] sm:$0xff]
    %v42 = vld [vmem:[#allocation2] sm:$0xff]
    %v43 = vld [vmem:[#allocation2 + $0x8] sm:$0xff]
    %v44 = vld [vmem:[#allocation2 + $0x10] sm:$0xff]
    %v45 = vld [vmem:[#allocation2 + $0x18] sm:$0xff]
    %v46 = vld [vmem:[%s2] sm:$0x1]
    %v48 = vlaneseq
    %v49 = vshrl.u32 %v48, 7
    %v50 = vsub.s32 0, %v49
    %v51 = vrot.slane %v46, %v50
    %vm53 = vcmask 261120
    %v55 = vsel %vm53, %v41, 0
    %57 = vmatprep.subr.mxu0 0.0
    %58 = vmatpush1.msra.mxu0 %v42
    %59 = vmatprep.subr.mxu0 0.0
    %60 = vmatpush1.msra.mxu0 %v43
    %61 = vmatprep.subr.mxu0 0.0
    %62 = vmatpush1.msra.mxu0 %v44
    %63 = vmatprep.subr.mxu0 0.0
    %64 = vmatpush1.msra.mxu0 %v45
    %65 = vmatprep.subr.mxu0 0.0
    %66 = vmatpush1.msra.mxu0 0.0
    %67 = vmatprep.subr.mxu0 0.0
    %68 = vmatpush1.msra.mxu0 0.0
    %69 = vmatprep.subr.mxu0 0.0
    %70 = vmatpush1.msra.mxu0 0.0
    %71 = vmatprep.subr.mxu0 0.0
    %72 = vmatpush1.msra.mxu0 0.0
    %73 = vmatprep.subr.mxu0 0.0
    %74 = vmatpush1.msra.mxu0 0.0
    %75 = vmatprep.subr.mxu0 0.0
    %76 = vmatpush1.msra.mxu0 0.0
    %77 = vmatprep.subr.mxu0 0.0
    %78 = vmatpush1.msra.mxu0 0.0
    %79 = vmatprep.subr.mxu0 0.0
    %80 = vmatpush1.msra.mxu0 0.0
    %81 = vmatprep.subr.mxu0 0.0
    %82 = vmatpush1.msra.mxu0 0.0
    %83 = vmatprep.subr.mxu0 0.0
    %84 = vmatpush1.msra.mxu0 0.0
    %85 = vmatprep.subr.mxu0 0.0
    %86 = vmatpush1.msra.mxu0 0.0
    %87 = vmatprep.subr.mxu0 0.0
    %88 = vmatpush1.msra.mxu0 0.0
    %89 = vmatprep.subr.mxu0 0.0
    %90 = vmatpush1.msra.mxu0 0.0
    %91 = vmatprep.subr.mxu0 0.0
    %92 = vmatpush1.msra.mxu0 0.0
    %93 = vmatprep.subr.mxu0 0.0
    %94 = vmatpush1.msra.mxu0 0.0
    %95 = vmatprep.subr.mxu0 0.0
    %96 = vmatpush1.msra.mxu0 0.0
    %97 = vmatprep.subr.mxu0 0.0
    %98 = vmatpush1.msra.mxu0 0.0
    %99 = vmatprep.subr.mxu0 0.0
    %100 = vmatpush1.msra.mxu0 0.0
    %101 = vmatprep.subr.mxu0 0.0
    %102 = vmatpush1.msra.mxu0 0.0
    %103 = vmatprep.subr.mxu0 0.0
    %104 = vmatpush1.msra.mxu0 0.0
    %105 = vmatprep.subr.mxu0 0.0
    %106 = vmatpush1.msra.mxu0 0.0
    %107 = vmatprep.subr.mxu0 0.0
    %108 = vmatpush1.msra.mxu0 0.0
    %109 = vmatprep.subr.mxu0 0.0
    %110 = vmatpush1.msra.mxu0 0.0
    %111 = vmatprep.subr.mxu0 0.0
    %112 = vmatpush1.msra.mxu0 0.0
    %113 = vmatprep.subr.mxu0 0.0
    %114 = vmatpush1.msra.mxu0 0.0
    %115 = vmatprep.subr.mxu0 0.0
    %116 = vmatpush1.msra.mxu0 0.0
    %117 = vmatprep.subr.mxu0 0.0
    %118 = vmatpush1.msra.mxu0 0.0
    %119 = vmatprep.subr.mxu0 0.0
    %120 = vmatpush1.msra.mxu0 0.0
    %121 = vmatprep.mubr.f32.mxu0 0.0
    %122 = vmatmul.mubr.f32.gmra.mrb[0].mxu0 %v55
    %v123 = vpop.f32.mrb[0].mxu0
    %v124 = vadd.f32 %v51, %v123
    %v125 = vpop.f32.mrb[0].mxu0
    %126 = vdwg.mxu0
    %v127 = vmax.f32 %v124, 0.0
    %v128 = vld [vmem:[%s3] sm:$0xff]
    %v129 = vld [vmem:[%s3 + $0x8] sm:$0xff]
    %v130 = vld [vmem:[%s3 + $0x10] sm:$0xff]
    %v131 = vld [vmem:[%s3 + $0x18] sm:$0xff]
    %v132 = vld [vmem:[%s3 + $0x20] sm:$0xff]
    %v133 = vld [vmem:[%s3 + $0x28] sm:$0xff]
    %v134 = vld [vmem:[%s3 + $0x30] sm:$0xff]
    %v135 = vld [vmem:[%s3 + $0x38] sm:$0xff]
    %v136 = vld [vmem:[%s3 + $0x40] sm:$0xff]
    %v137 = vld [vmem:[%s3 + $0x48] sm:$0xff]
    %v138 = vld [vmem:[%s3 + $0x50] sm:$0xff]
    %v139 = vld [vmem:[%s3 + $0x58] sm:$0xff]
    %v140 = vld [vmem:[%s3 + $0x60] sm:$0xff]
    %v141 = vld [vmem:[%s3 + $0x68] sm:$0xff]
    %v142 = vld [vmem:[%s3 + $0x70] sm:$0xff]
    %v143 = vld [vmem:[%s3 + $0x78] sm:$0xff]
    %v144 = vld [vmem:[%s4] sm:$0x1]
    %v146 = vlaneseq
    %v147 = vshrl.u32 %v146, 7
    %v148 = vsub.s32 0, %v147
    %v149 = vrot.slane %v144, %v148
    %151 = vmatprep.subr.mxu0 0.0
    %152 = vmatpush1.msra.mxu0 %v128
    %153 = vmatprep.subr.mxu0 0.0
    %154 = vmatpush1.msra.mxu0 %v129
    %155 = vmatprep.subr.mxu0 0.0
    %156 = vmatpush1.msra.mxu0 %v130
    %157 = vmatprep.subr.mxu0 0.0
    %158 = vmatpush1.msra.mxu0 %v131
    %159 = vmatprep.subr.mxu0 0.0
    %160 = vmatpush1.msra.mxu0 %v132
    %161 = vmatprep.subr.mxu0 0.0
    %162 = vmatpush1.msra.mxu0 %v133
    %163 = vmatprep.subr.mxu0 0.0
    %164 = vmatpush1.msra.mxu0 %v134
    %165 = vmatprep.subr.mxu0 0.0
    %166 = vmatpush1.msra.mxu0 %v135
    %167 = vmatprep.subr.mxu0 0.0
    %168 = vmatpush1.msra.mxu0 %v136
    %169 = vmatprep.subr.mxu0 0.0
    %170 = vmatpush1.msra.mxu0 %v137
    %171 = vmatprep.subr.mxu0 0.0
    %172 = vmatpush1.msra.mxu0 %v138
    %173 = vmatprep.subr.mxu0 0.0
    %174 = vmatpush1.msra.mxu0 %v139
    %175 = vmatprep.subr.mxu0 0.0
    %176 = vmatpush1.msra.mxu0 %v140
    %177 = vmatprep.subr.mxu0 0.0
    %178 = vmatpush1.msra.mxu0 %v141
    %179 = vmatprep.subr.mxu0 0.0
    %180 = vmatpush1.msra.mxu0 %v142
    %181 = vmatprep.subr.mxu0 0.0
    %182 = vmatpush1.msra.mxu0 %v143
    %183 = vmatprep.subr.mxu0 0.0
    %184 = vmatpush1.msra.mxu0 0.0
    %185 = vmatprep.subr.mxu0 0.0
    %186 = vmatpush1.msra.mxu0 0.0
    %187 = vmatprep.subr.mxu0 0.0
    %188 = vmatpush1.msra.mxu0 0.0
    %189 = vmatprep.subr.mxu0 0.0
    %190 = vmatpush1.msra.mxu0 0.0
    %191 = vmatprep.subr.mxu0 0.0
    %192 = vmatpush1.msra.mxu0 0.0
    %193 = vmatprep.subr.mxu0 0.0
    %194 = vmatpush1.msra.mxu0 0.0
    %195 = vmatprep.subr.mxu0 0.0
    %196 = vmatpush1.msra.mxu0 0.0
    %197 = vmatprep.subr.mxu0 0.0
    %198 = vmatpush1.msra.mxu0 0.0
    %199 = vmatprep.subr.mxu0 0.0
    %200 = vmatpush1.msra.mxu0 0.0
    %201 = vmatprep.subr.mxu0 0.0
    %202 = vmatpush1.msra.mxu0 0.0
    %203 = vmatprep.subr.mxu0 0.0
    %204 = vmatpush1.msra.mxu0 0.0
    %205 = vmatprep.subr.mxu0 0.0
    %206 = vmatpush1.msra.mxu0 0.0
    %207 = vmatprep.subr.mxu0 0.0
    %208 = vmatpush1.msra.mxu0 0.0
    %209 = vmatprep.subr.mxu0 0.0
    %210 = vmatpush1.msra.mxu0 0.0
    %211 = vmatprep.subr.mxu0 0.0
    %212 = vmatpush1.msra.mxu0 0.0
    %213 = vmatprep.subr.mxu0 0.0
    %214 = vmatpush1.msra.mxu0 0.0
    %215 = vmatprep.mubr.f32.mxu0 0.0
    %216 = vmatmul.mubr.f32.gmra.mrb[0].mxu0 %v127
    %v217 = vpop.f32.mrb[0].mxu0
    %v218 = vadd.f32 %v149, %v217
    %v219 = vpop.f32.mrb[0].mxu0
    %220 = vdwg.mxu0
    %v221 = vmax.f32 %v218, 0.0
    %v222 = vld [vmem:[%s5] sm:$0xff]
    %v223 = vld [vmem:[%s5 + $0x8] sm:$0xff]
    %v224 = vld [vmem:[%s5 + $0x10] sm:$0xff]
    %v225 = vld [vmem:[%s5 + $0x18] sm:$0xff]
    %v226 = vld [vmem:[%s5 + $0x20] sm:$0xff]
    %v227 = vld [vmem:[%s5 + $0x28] sm:$0xff]
    %v228 = vld [vmem:[%s5 + $0x30] sm:$0xff]
    %v229 = vld [vmem:[%s5 + $0x38] sm:$0xff]
    %v230 = vld [vmem:[%s5 + $0x40] sm:$0xff]
    %v231 = vld [vmem:[%s5 + $0x48] sm:$0xff]
    %v232 = vld [vmem:[%s5 + $0x50] sm:$0xff]
    %v233 = vld [vmem:[%s5 + $0x58] sm:$0xff]
    %v234 = vld [vmem:[%s5 + $0x60] sm:$0xff]
    %v235 = vld [vmem:[%s5 + $0x68] sm:$0xff]
    %v236 = vld [vmem:[%s5 + $0x70] sm:$0xff]
    %v237 = vld [vmem:[%s5 + $0x78] sm:$0xff]
    %v238 = vld [vmem:[%s6] sm:$0x1]
    %v240 = vlaneseq
    %v241 = vshrl.u32 %v240, 7
    %v242 = vsub.s32 0, %v241
    %v243 = vrot.slane %v238, %v242
    %245 = vmatprep.subr.mxu0 0.0
    %246 = vmatpush1.msra.mxu0 %v222
    %247 = vmatprep.subr.mxu0 0.0
    %248 = vmatpush1.msra.mxu0 %v223
    %249 = vmatprep.subr.mxu0 0.0
    %250 = vmatpush1.msra.mxu0 %v224
    %251 = vmatprep.subr.mxu0 0.0
    %252 = vmatpush1.msra.mxu0 %v225
    %253 = vmatprep.subr.mxu0 0.0
    %254 = vmatpush1.msra.mxu0 %v226
    %255 = vmatprep.subr.mxu0 0.0
    %256 = vmatpush1.msra.mxu0 %v227
    %257 = vmatprep.subr.mxu0 0.0
    %258 = vmatpush1.msra.mxu0 %v228
    %259 = vmatprep.subr.mxu0 0.0
    %260 = vmatpush1.msra.mxu0 %v229
    %261 = vmatprep.subr.mxu0 0.0
    %262 = vmatpush1.msra.mxu0 %v230
    %263 = vmatprep.subr.mxu0 0.0
    %264 = vmatpush1.msra.mxu0 %v231
    %265 = vmatprep.subr.mxu0 0.0
    %266 = vmatpush1.msra.mxu0 %v232
    %267 = vmatprep.subr.mxu0 0.0
    %268 = vmatpush1.msra.mxu0 %v233
    %269 = vmatprep.subr.mxu0 0.0
    %270 = vmatpush1.msra.mxu0 %v234
    %271 = vmatprep.subr.mxu0 0.0
    %272 = vmatpush1.msra.mxu0 %v235
    %273 = vmatprep.subr.mxu0 0.0
    %274 = vmatpush1.msra.mxu0 %v236
    %275 = vmatprep.subr.mxu0 0.0
    %276 = vmatpush1.msra.mxu0 %v237
    %277 = vmatprep.subr.mxu0 0.0
    %278 = vmatpush1.msra.mxu0 0.0
    %279 = vmatprep.subr.mxu0 0.0
    %280 = vmatpush1.msra.mxu0 0.0
    %281 = vmatprep.subr.mxu0 0.0
    %282 = vmatpush1.msra.mxu0 0.0
    %283 = vmatprep.subr.mxu0 0.0
    %284 = vmatpush1.msra.mxu0 0.0
    %285 = vmatprep.subr.mxu0 0.0
    %286 = vmatpush1.msra.mxu0 0.0
    %287 = vmatprep.subr.mxu0 0.0
    %288 = vmatpush1.msra.mxu0 0.0
    %289 = vmatprep.subr.mxu0 0.0
    %290 = vmatpush1.msra.mxu0 0.0
    %291 = vmatprep.subr.mxu0 0.0
    %292 = vmatpush1.msra.mxu0 0.0
    %293 = vmatprep.subr.mxu0 0.0
    %294 = vmatpush1.msra.mxu0 0.0
    %295 = vmatprep.subr.mxu0 0.0
    %296 = vmatpush1.msra.mxu0 0.0
    %297 = vmatprep.subr.mxu0 0.0
    %298 = vmatpush1.msra.mxu0 0.0
    %299 = vmatprep.subr.mxu0 0.0
    %300 = vmatpush1.msra.mxu0 0.0
    %301 = vmatprep.subr.mxu0 0.0
    %302 = vmatpush1.msra.mxu0 0.0
    %303 = vmatprep.subr.mxu0 0.0
    %304 = vmatpush1.msra.mxu0 0.0
    %305 = vmatprep.subr.mxu0 0.0
    %306 = vmatpush1.msra.mxu0 0.0
    %307 = vmatprep.subr.mxu0 0.0
    %308 = vmatpush1.msra.mxu0 0.0
    %309 = vmatprep.mubr.f32.mxu0 0.0
    %310 = vmatmul.mubr.f32.gmra.mrb[0].mxu0 %v221
    %v311 = vpop.f32.mrb[0].mxu0
    %v312 = vadd.f32 %v243, %v311
    %v313 = vpop.f32.mrb[0].mxu0
    %314 = vdwg.mxu0
    %v315 = vmax.f32 %v312, 0.0
    %vm316 = vcmask 64512
    %317 = vst.msk [vmem:[#allocation5] sm:$0xff] %vm316, %v315
    // Predicated region
    $region34: #{net_forward.1} parent=1 // pred_check
      _
    $region35: #{net_forward.1} parent=1 // pred_check_branch
      %319 = sbr.rel (0) target = $region37
    $region36: #{net_forward.1} parent=1 // pred_region
      %s321 = ssub.s32 128, 128
      %322 = vsyncadd [#allocation4], %s321
      %s324 = sshll.u32 [#allocation5], 4
      %s325 = int_to_ptr.vmem [resolvable:$true] %s324
      %327 = dma.vmem_to_hbm [thread:$0]  %s325, 128, %s7, [#allocation4]
    $region37: #{net_forward.1} parent=1 // pred_fallthru
      _
    // Predicated region
    $region38: #{net_forward.1} parent=1 // pred_check
      _
    $region39: #{net_forward.1} parent=1 // pred_check_branch
      %329 = sbr.rel (0) target = $region41
    $region40: #{net_forward.1} parent=1 // pred_region
      %330 = dma.done [#allocation4], 128
    $region41: #{net_forward.1} parent=1 // pred_fallthru
      _
    %331 = vsyncpa [#allocation3], 1
    %332 = vsyncpa [#allocation4], 1

</llo_original>
